<compile_context>
chip_gen: v7x
topology: tpu7x:2x2x1
jax: 0.10.0
libtpu: 0.0.40
codegen_flags: <defaults>
</compile_context>

<pallas_src>
import functools

import jax
import jax.numpy as jnp
from jax import lax
from jax.experimental import pallas as pl
from jax.experimental.pallas import tpu as pltpu


def _cdiv(a: int, b: int) -> int:
    return -(-a // b)


def _round_up(x: int, m: int) -> int:
    return _cdiv(x, m) * m


def _vmem_capacity_bytes() -> int:
    """Physical VMEM per TensorCore (128 MiB v5e/v6e, 64 MiB v7x); safe fallback."""
    try:
        cap = int(getattr(pltpu.get_tpu_info(), "vmem_capacity_bytes", 0))
        if cap > 0:
            return cap
    except Exception:
        pass
    return 64 * 1024 * 1024  # conservative (v7x-sized) default


def _msa_transition_kernel(m_ref, mask_ref, w1_ref, b1_ref, w2_ref, b2_ref, o_ref):
    x = m_ref[...].astype(jnp.float32)
    inv_c = 1.0 / x.shape[-1]

    # --- LayerNorm stats in one pass: both reductions depend only on x ---
    mu = jnp.sum(x, axis=-1, keepdims=True) * inv_c
    msq = jnp.sum(x * x, axis=-1, keepdims=True) * inv_c
    var = jnp.maximum(msq - mu * mu, 0.0)
    xn = (x - mu) * lax.rsqrt(var + 1e-5)
    # gamma/beta are folded into W1/b1 in the wrapper.

    # --- Linear 1 (C -> H): bf16 MXU operands, f32 accumulation, fused epilogue ---
    h = jnp.maximum(
        jnp.dot(xn.astype(jnp.bfloat16), w1_ref[...],
                preferred_element_type=jnp.float32) + b1_ref[...],
        0.0,
    ).astype(jnp.bfloat16)

    # --- Linear 2 (H -> C) ---
    y = jnp.dot(h, w2_ref[...], preferred_element_type=jnp.float32) + b2_ref[...]

    # --- mask * y + residual (re-read the resident input block; don't keep x live) ---
    o_ref[...] = (m_ref[...].astype(jnp.float32)
                  + y * mask_ref[...].astype(jnp.float32)).astype(o_ref.dtype)


def _pick_tile_rows(tile_rows: int, rows: int, C: int, H: int,
                    m_bytes: int, sub: int, vmem_budget: int) -> int:
    """Largest sublane-rounded row tile <= tile_rows with >=2 grid steps that fits VMEM."""
    # >= 2 grid steps so v7x's two TensorCores both get work.
    cap = _round_up(_cdiv(rows, 2), sub)
    tile = _round_up(max(min(tile_rows, cap), sub), sub)

    def est(t):
        io = 2 * t * C * m_bytes * 2              # m-in + out tiles, double-buffered
        io += t * 128 * 2 * 2                     # (t,1) bf16 mask, lane-padded, x2 buffers
        w = (C * H + H * C) * 2 * 2               # bf16 W1 + W2, double-buffered
        w += (8 * H + 8 * C) * 4 * 2              # f32 biases (sublane-padded), x2 buffers
        tmp = t * C * (4 + 4 + 2 + 4)             # x/xn f32, xn bf16, y f32
        tmp += t * H * (4 + 2)                    # h f32 (pre-cast) + h bf16
        return io + w + tmp

    while tile > sub and est(tile) > vmem_budget:
        tile = _round_up(max(tile // 2, sub), sub)
    return tile


@functools.partial(jax.jit, static_argnames=("tile_rows",))
def msa_transition(m, mask, gamma, beta, w1_t, b1, w2_t, b2, *, tile_rows=4096):
    """m: [B, N_seq, N_res, c_m]; mask: [B, N_seq, N_res] (or None -> all ones)."""
    B, S, R, C = m.shape
    H = w1_t.shape[1]
    rows = B * S * R
    itemsize = jnp.dtype(m.dtype).itemsize
    sub = 8 * max(1, 4 // itemsize)               # 8 (f32) / 16 (bf16) / 32 (int8)

    # Generation-aware VMEM sizing (128 MiB v5e/v6e, 64 MiB v7x).
    vmem_cap = _vmem_capacity_bytes()
    vmem_budget = (vmem_cap * 70) // 100
    vmem_limit = (vmem_cap * 78) // 100

    tile = _pick_tile_rows(tile_rows, rows, C, H, itemsize, sub, vmem_budget)
    grid = (pl.cdiv(rows, tile),)                 # ragged last block handled by Pallas

    if mask is None:
        mask = jnp.ones((B, S, R), dtype=jnp.float32)

    m2 = m.reshape(rows, C)                       # no padding, no post-slice
    mask2 = mask.reshape(rows, 1).astype(jnp.bfloat16)   # 0/1 exact in bf16

    # Fold LayerNorm affine into Linear-1:  (xn*g+b)@W1 + b1 == xn@(g*W1) + (b@W1 + b1)
    w1f = w1_t.astype(jnp.float32)
    w1_fold = (gamma.astype(jnp.float32)[:, None] * w1f).astype(jnp.bfloat16)   # (C, H)
    b1_fold = (b1.astype(jnp.float32)
               + beta.astype(jnp.float32) @ w1f).reshape(1, H)                  # (1, H) f32
    w2b = w2_t.astype(jnp.bfloat16)                                             # (H, C)
    b2_2 = b2.reshape(1, C).astype(jnp.float32)

    out = pl.pallas_call(
        _msa_transition_kernel,
        out_shape=jax.ShapeDtypeStruct((rows, C), m.dtype),
        grid_spec=pltpu.PrefetchScalarGridSpec(
            num_scalar_prefetch=0,
            grid=grid,
            in_specs=[
                pl.BlockSpec((tile, C), lambda i: (i, 0)),   # m rows
                pl.BlockSpec((tile, 1), lambda i: (i, 0)),   # mask rows (bf16)
                pl.BlockSpec((C, H), lambda i: (0, 0)),      # W1^T (gamma folded, bf16)
                pl.BlockSpec((1, H), lambda i: (0, 0)),      # b1 (beta folded, f32)
                pl.BlockSpec((H, C), lambda i: (0, 0)),      # W2^T (bf16)
                pl.BlockSpec((1, C), lambda i: (0, 0)),      # b2 (f32)
            ],
            out_specs=pl.BlockSpec((tile, C), lambda i: (i, 0)),
        ),
        compiler_params=pltpu.CompilerParams(
            dimension_semantics=("parallel",),    # >=2 steps guaranteed -> both v7x TCs used
            vmem_limit_bytes=int(vmem_limit),
        ),
    )(m2, mask2, w1_fold, b1_fold, w2b, b2_2)

    return out.reshape(B, S, R, C)


def _reference_f32(m, mask, gamma, beta, w1_t, b1, w2_t, b2):
    """Pure-f32 reference faithful to the PyTorch module (LN -> lin -> relu -> lin -> mask+res)."""
    x = m.astype(jnp.float32)
    mu = jnp.mean(x, axis=-1, keepdims=True)
    var = jnp.mean((x - mu) ** 2, axis=-1, keepdims=True)
    xn = (x - mu) * lax.rsqrt(var + 1e-5) * gamma + beta
    h = jnp.maximum(xn @ w1_t.astype(jnp.float32) + b1, 0.0)
    y = h @ w2_t.astype(jnp.float32) + b2
    return x + y * mask[..., None].astype(jnp.float32)


if __name__ == "__main__":
    # Small shapes consistent with the module: [batch, N_seq, N_res, c_m], hidden = n*c_m.
    B, S, R, C = 2, 8, 16, 32
    N_MULT = 4
    H = N_MULT * C

    key = jax.random.PRNGKey(0)
    k_m, k_mask, k_g, k_b, k_w1, k_b1, k_w2, k_b2 = jax.random.split(key, 8)

    m = jax.random.normal(k_m, (B, S, R, C), dtype=jnp.float32)
    mask = (jax.random.uniform(k_mask, (B, S, R)) > 0.2).astype(jnp.float32)

    gamma = 1.0 + 0.1 * jax.random.normal(k_g, (C,), dtype=jnp.float32)
    beta = 0.1 * jax.random.normal(k_b, (C,), dtype=jnp.float32)
    # PyTorch Linear weight is [out, in]; we store the transpose [in, out].
    w1_t = 0.1 * jax.random.normal(k_w1, (C, H), dtype=jnp.float32)
    b1 = 0.1 * jax.random.normal(k_b1, (H,), dtype=jnp.float32)
    w2_t = 0.1 * jax.random.normal(k_w2, (H, C), dtype=jnp.float32)
    b2 = 0.1 * jax.random.normal(k_b2, (C,), dtype=jnp.float32)

    ref = _reference_f32(m, mask, gamma, beta, w1_t, b1, w2_t, b2)

    # Default path: tile capped at ceil(rows/2)=128 -> grid=(2,), exact division.
    out = jax.block_until_ready(msa_transition(m, mask, gamma, beta, w1_t, b1, w2_t, b2))
    assert out.shape == m.shape and out.dtype == m.dtype
    # Tolerance reflects bf16 MXU operands (f32 accumulation).
    assert jnp.allclose(out.astype(jnp.float32), ref, atol=4e-2, rtol=4e-2), "mismatch vs reference"

    # Ragged-grid path: rows=256, tile=96 -> grid=3 with a partial last block (no pad/slice).
    out_tail = jax.block_until_ready(
        msa_transition(m, mask, gamma, beta, w1_t, b1, w2_t, b2, tile_rows=96))
    assert jnp.allclose(out_tail.astype(jnp.float32), ref, atol=4e-2, rtol=4e-2), "tail-tile mismatch"

    # bf16 activation path (dtype-preserving wrapper; 16-row sublane rounding).
    m_bf = m.astype(jnp.bfloat16)
    ref_bf = _reference_f32(m_bf, mask, gamma, beta, w1_t, b1, w2_t, b2)
    out_bf = jax.block_until_ready(
        msa_transition(m_bf, mask, gamma, beta, w1_t, b1, w2_t, b2))
    assert out_bf.dtype == jnp.bfloat16
    assert jnp.allclose(out_bf.astype(jnp.float32), ref_bf, atol=6e-2, rtol=6e-2), "bf16 mismatch"

    print("KERNEL_OK")
</pallas_src>

<mosaic_0001>
module attributes {stable_mosaic.version = 11 : i64} {
  func.func @_msa_transition_kernel(%arg0: i32, %arg1: memref<128x32xf32, #tpu.memory_space<vmem>>, %arg2: memref<128x1xbf16, #tpu.memory_space<vmem>>, %arg3: memref<32x128xbf16, #tpu.memory_space<vmem>>, %arg4: memref<1x128xf32, #tpu.memory_space<vmem>>, %arg5: memref<128x32xbf16, #tpu.memory_space<vmem>>, %arg6: memref<1x32xf32, #tpu.memory_space<vmem>>, %arg7: memref<128x32xf32, #tpu.memory_space<vmem>>) attributes {dimension_semantics = [#tpu.dimension_semantics<parallel>], iteration_bounds = array<i64: 2>, scalar_prefetch = 0 : i64, scratch_operands = 0 : i64, tpu.core_type = #tpu.core_type<tc>, window_params = [{transform_indices = @transform_0, window_bounds = array<i64: 128, 32>}, {transform_indices = @transform_1, window_bounds = array<i64: 128, 1>}, {pipeline_mode = #tpu.pipeline_mode<synchronous>, transform_indices = @transform_2, window_bounds = array<i64: 32, 128>}, {pipeline_mode = #tpu.pipeline_mode<synchronous>, transform_indices = @transform_3, window_bounds = array<i64: 1, 128>}, {pipeline_mode = #tpu.pipeline_mode<synchronous>, transform_indices = @transform_4, window_bounds = array<i64: 128, 32>}, {pipeline_mode = #tpu.pipeline_mode<synchronous>, transform_indices = @transform_5, window_bounds = array<i64: 1, 32>}, {transform_indices = @transform_6, window_bounds = array<i64: 128, 32>}]} {
    %c0 = arith.constant 0 : index
    %c0_0 = arith.constant 0 : index
    %0 = vector.load %arg1[%c0, %c0_0] : memref<128x32xf32, #tpu.memory_space<vmem>>, vector<128x32xf32>
    %cst = arith.constant dense<0.000000e+00> : vector<128xf32>
    %1 = vector.multi_reduction <add>, %0, %cst [1] : vector<128x32xf32> to vector<128xf32>
    %2 = vector.shape_cast %1 : vector<128xf32> to vector<128x1xf32>
    %cst_1 = arith.constant 3.125000e-02 : f32
    %3 = vector.broadcast %cst_1 : f32 to vector<128x1xf32>
    %4 = arith.mulf %2, %3 : vector<128x1xf32>
    %5 = arith.mulf %0, %0 : vector<128x32xf32>
    %cst_2 = arith.constant dense<0.000000e+00> : vector<128xf32>
    %6 = vector.multi_reduction <add>, %5, %cst_2 [1] : vector<128x32xf32> to vector<128xf32>
    %7 = vector.shape_cast %6 : vector<128xf32> to vector<128x1xf32>
    %cst_3 = arith.constant 3.125000e-02 : f32
    %8 = vector.broadcast %cst_3 : f32 to vector<128x1xf32>
    %9 = arith.mulf %7, %8 : vector<128x1xf32>
    %10 = arith.mulf %4, %4 : vector<128x1xf32>
    %11 = arith.subf %9, %10 : vector<128x1xf32>
    %cst_4 = arith.constant 0.000000e+00 : f32
    %12 = vector.broadcast %cst_4 : f32 to vector<128x1xf32>
    %13 = arith.maximumf %11, %12 : vector<128x1xf32>
    %14 = vector.broadcast %4 : vector<128x1xf32> to vector<128x32xf32>
    %15 = arith.subf %0, %14 : vector<128x32xf32>
    %cst_5 = arith.constant 9.99999974E-6 : f32
    %16 = vector.broadcast %cst_5 : f32 to vector<128x1xf32>
    %17 = arith.addf %13, %16 : vector<128x1xf32>
    %18 = math.rsqrt %17 : vector<128x1xf32>
    %19 = vector.broadcast %18 : vector<128x1xf32> to vector<128x32xf32>
    %20 = arith.mulf %15, %19 : vector<128x32xf32>
    %21 = arith.truncf %20 : vector<128x32xf32> to vector<128x32xbf16>
    %c0_6 = arith.constant 0 : index
    %c0_7 = arith.constant 0 : index
    %22 = vector.load %arg3[%c0_6, %c0_7] : memref<32x128xbf16, #tpu.memory_space<vmem>>, vector<32x128xbf16>
    %cst_8 = arith.constant dense<0.000000e+00> : vector<128x128xf32>
    %23 = tpu.matmul %21, %22, %cst_8 {dimension_numbers = #tpu.dot_dimension_numbers<[1], [0], [0], [1], [0, 0, 1, 1], [], []>} : vector<128x32xbf16>, vector<32x128xbf16>, vector<128x128xf32> -> vector<128x128xf32>
    %c0_9 = arith.constant 0 : index
    %c0_10 = arith.constant 0 : index
    %24 = vector.load %arg4[%c0_9, %c0_10] : memref<1x128xf32, #tpu.memory_space<vmem>>, vector<1x128xf32>
    %25 = vector.broadcast %24 : vector<1x128xf32> to vector<128x128xf32>
    %26 = arith.addf %23, %25 : vector<128x128xf32>
    %cst_11 = arith.constant 0.000000e+00 : f32
    %27 = vector.broadcast %cst_11 : f32 to vector<128x128xf32>
    %28 = arith.maximumf %26, %27 : vector<128x128xf32>
    %29 = arith.truncf %28 : vector<128x128xf32> to vector<128x128xbf16>
    %c0_12 = arith.constant 0 : index
    %c0_13 = arith.constant 0 : index
    %30 = vector.load %arg5[%c0_12, %c0_13] : memref<128x32xbf16, #tpu.memory_space<vmem>>, vector<128x32xbf16>
    %cst_14 = arith.constant dense<0.000000e+00> : vector<128x32xf32>
    %31 = tpu.matmul %29, %30, %cst_14 {dimension_numbers = #tpu.dot_dimension_numbers<[1], [0], [0], [1], [0, 0, 1, 1], [], []>} : vector<128x128xbf16>, vector<128x32xbf16>, vector<128x32xf32> -> vector<128x32xf32>
    %c0_15 = arith.constant 0 : index
    %c0_16 = arith.constant 0 : index
    %32 = vector.load %arg6[%c0_15, %c0_16] : memref<1x32xf32, #tpu.memory_space<vmem>>, vector<1x32xf32>
    %33 = vector.broadcast %32 : vector<1x32xf32> to vector<128x32xf32>
    %34 = arith.addf %31, %33 : vector<128x32xf32>
    %c0_17 = arith.constant 0 : index
    %c0_18 = arith.constant 0 : index
    %35 = vector.load %arg1[%c0_17, %c0_18] : memref<128x32xf32, #tpu.memory_space<vmem>>, vector<128x32xf32>
    %c0_19 = arith.constant 0 : index
    %c0_20 = arith.constant 0 : index
    %36 = vector.load %arg2[%c0_19, %c0_20] : memref<128x1xbf16, #tpu.memory_space<vmem>>, vector<128x1xbf16>
    %37 = arith.extf %36 : vector<128x1xbf16> to vector<128x1xf32>
    %38 = vector.broadcast %37 : vector<128x1xf32> to vector<128x32xf32>
    %39 = arith.mulf %34, %38 : vector<128x32xf32>
    %40 = arith.addf %35, %39 : vector<128x32xf32>
    %c0_21 = arith.constant 0 : index
    %c0_22 = arith.constant 0 : index
    %41 = vector.load %arg7[%c0_21, %c0_22] : memref<128x32xf32, #tpu.memory_space<vmem>>, vector<128x32xf32>
    tpu.vector_store %arg7[%c0_21, %c0_22], %40 {strides = array<i32>} : memref<128x32xf32, #tpu.memory_space<vmem>>, vector<128x32xf32>,
    return
  }
  func.func @transform_0(%arg0: i32) -> (i32, i32) {
    %c0_i32 = arith.constant 0 : i32
    %c0_i32_0 = arith.constant 0 : i32
    return %arg0, %c0_i32 : i32, i32
  }
  func.func @transform_1(%arg0: i32) -> (i32, i32) {
    %c0_i32 = arith.constant 0 : i32
    %c0_i32_0 = arith.constant 0 : i32
    return %arg0, %c0_i32 : i32, i32
  }
  func.func @transform_2(%arg0: i32) -> (i32, i32) {
    %c0_i32 = arith.constant 0 : i32
    %c0_i32_0 = arith.constant 0 : i32
    %c0_i32_1 = arith.constant 0 : i32
    return %c0_i32, %c0_i32_0 : i32, i32
  }
  func.func @transform_3(%arg0: i32) -> (i32, i32) {
    %c0_i32 = arith.constant 0 : i32
    %c0_i32_0 = arith.constant 0 : i32
    %c0_i32_1 = arith.constant 0 : i32
    return %c0_i32, %c0_i32_0 : i32, i32
  }
  func.func @transform_4(%arg0: i32) -> (i32, i32) {
    %c0_i32 = arith.constant 0 : i32
    %c0_i32_0 = arith.constant 0 : i32
    %c0_i32_1 = arith.constant 0 : i32
    return %c0_i32, %c0_i32_0 : i32, i32
  }
  func.func @transform_5(%arg0: i32) -> (i32, i32) {
    %c0_i32 = arith.constant 0 : i32
    %c0_i32_0 = arith.constant 0 : i32
    %c0_i32_1 = arith.constant 0 : i32
    return %c0_i32, %c0_i32_0 : i32, i32
  }
  func.func @transform_6(%arg0: i32) -> (i32, i32) {
    %c0_i32 = arith.constant 0 : i32
    %c0_i32_0 = arith.constant 0 : i32
    return %arg0, %c0_i32 : i32, i32
  }
}

</mosaic_0001>

<llo_original>
// kernel: msa_transition.1
$region0: #{msa_transition.1}
  #allocation0 [shape = 'u32[]', space=smem, size = 0x4, offset = 0x4, fixed_abs, tag = 'smem constant byte address 0x4 - core index']
  #allocation1 [shape = 'u32[144,128]{1,0:T(1,128)}', space=vmem, size = 0x12000, scoped, tag = 'internal scratch']
  %s0 = inlined_call_operand.vmem [shape: f32[256,32], index: 0, kind: input, shape index: {}]
  %s1 = inlined_call_operand.vmem [shape: bf16[256,1], index: 1, kind: input, shape index: {}]
  %s2 = inlined_call_operand.vmem [shape: bf16[32,128], index: 2, kind: input, shape index: {}]
  %s3 = inlined_call_operand.vmem [shape: f32[1,128], index: 3, kind: input, shape index: {}]
  %s4 = inlined_call_operand.vmem [shape: bf16[128,32], index: 4, kind: input, shape index: {}]
  %s5 = inlined_call_operand.vmem [shape: f32[1,32], index: 5, kind: input, shape index: {}]
  %s6 = inlined_call_operand.hbm [shape: f32[256,32], index: 6, kind: output, shape index: {}]
  %s7 = sld [smem:[#allocation0]]
  $region57: #{msa_transition.1} parent=0
    _
  %s9 = ssub.s32 1, %s7
  %s10 = scalar_select 0, %s9, %s7
  $region1: #{msa_transition.1} parent=0
    #allocation2 [shape = 'u8[131072]{0}', space=vmem, size = 0x20000, scoped, tag = 'output window, operand 0']
    #allocation3 [shape = 's32[2]{0}', space=sflag, size = 0x8, scoped, tag = 'scoped memory for msa_transition.1']
    %11 = vsyncpa [#allocation3], 0
    %s12 = scalar_lea.sflag [#allocation3], 1
    %13 = vsyncpa %s12, 0
    loop: start=0, step=1, limit=4
    $region2: #{msa_transition.1} parent=1 // loop_pre_header
      _
    $region3: #{msa_transition.1} parent=1 // loop_header
      %s15 = sphi 0, %s19
      %p16 = scmp.ge.s32.totalorder %s15, 4
      %s25 = sphi 0, %s27
      %s28 = sphi 0, %s25
      %s29 = sphi 0, %s28
      %s45 = sphi 0, %s29
      %s51 = sphi 0, %s53
      %s54 = sphi 0, %s51
      %s55 = sphi 0, %s54
      %s71 = sphi 0, %s55
      %s75 = sphi 0, %s75
      %s77 = sphi 0, %s75
      %s78 = sphi 0, %s77
      %s92 = sphi 0, %s78
      %s96 = sphi 0, %s96
      %s98 = sphi 0, %s96
      %s99 = sphi 0, %s98
      %s113 = sphi 0, %s99
      %s117 = sphi 0, %s117
      %s119 = sphi 0, %s117
      %s120 = sphi 0, %s119
      %s134 = sphi 0, %s120
      %s138 = sphi 0, %s138
      %s140 = sphi 0, %s138
      %s141 = sphi 0, %s140
      %s155 = sphi 0, %s141
      %s161 = sphi 0, %s163
      %s164 = sphi 0, %s161
      %s165 = sphi 0, %s164
      %s181 = sphi 0, %s165
    $region4: #{msa_transition.1} parent=1 // loop_header_branch
      %18 = sbr.rel (%p16) target = $region8
    $region5: #{msa_transition.1} parent=1 // loop_body
      %s20 = ssub.s32 %s15, 1
      %s21 = ssub.s32 %s15, 2
      %s22 = sadd.s32 %s15, 1
      %s23 = ssub.s32 %s15, %s22
      %p24 = scmp.eq.s32.totalorder %s23, 0
      %s26 = sadd.s32 %s25, 1
      %s27 = scalar_select %p24, %s25, %s26
      %p30 = pneg %p24
      %p31 = scmp.eq.s32.totalorder %s15, 1
      %p32 = por %p30, %p31
      %p33 = scmp.ne.s32.totalorder %s25, %s28
      %p34 = scmp.eq.s32.totalorder %s15, 0
      %p35 = por %p33, %p34
      %p36 = scmp.ne.s32.totalorder %s25, %s28
      %p37 = scmp.eq.s32.totalorder %s20, 1
      %p38 = por %p36, %p37
      %p39 = scmp.ne.s32.totalorder %s28, %s29
      %p40 = scmp.eq.s32.totalorder %s20, 0
      %p41 = por %p39, %p40
      %p42 = scmp.ne.s32.totalorder %s28, %s29
      %p43 = scmp.eq.s32.totalorder %s21, 1
      %p44 = por %p42, %p43
      %p46 = scmp.ne.s32.totalorder %s29, %s45
      %p47 = scmp.eq.s32.totalorder %s21, 0
      %p48 = por %p46, %p47
      %s49 = ssub.s32 %s15, %s22
      %p50 = scmp.eq.s32.totalorder %s49, 0
      %s52 = sadd.s32 %s51, 1
      %s53 = scalar_select %p50, %s51, %s52
      %p56 = pneg %p50
      %p57 = scmp.eq.s32.totalorder %s15, 1
      %p58 = por %p56, %p57
      %p59 = scmp.ne.s32.totalorder %s51, %s54
      %p60 = scmp.eq.s32.totalorder %s15, 0
      %p61 = por %p59, %p60
      %p62 = scmp.ne.s32.totalorder %s51, %s54
      %p63 = scmp.eq.s32.totalorder %s20, 1
      %p64 = por %p62, %p63
      %p65 = scmp.ne.s32.totalorder %s54, %s55
      %p66 = scmp.eq.s32.totalorder %s20, 0
      %p67 = por %p65, %p66
      %p68 = scmp.ne.s32.totalorder %s54, %s55
      %p69 = scmp.eq.s32.totalorder %s21, 1
      %p70 = por %p68, %p69
      %p72 = scmp.ne.s32.totalorder %s55, %s71
      %p73 = scmp.eq.s32.totalorder %s21, 0
      %p74 = por %p72, %p73
      %s76 = sadd.s32 %s75, 1
      %p79 = scmp.eq.s32.totalorder %s15, 1
      %p80 = scmp.ne.s32.totalorder %s75, %s77
      %p81 = scmp.eq.s32.totalorder %s15, 0
      %p82 = por %p80, %p81
      %p83 = scmp.ne.s32.totalorder %s75, %s77
      %p84 = scmp.eq.s32.totalorder %s20, 1
      %p85 = por %p83, %p84
      %p86 = scmp.ne.s32.totalorder %s77, %s78
      %p87 = scmp.eq.s32.totalorder %s20, 0
      %p88 = por %p86, %p87
      %p89 = scmp.ne.s32.totalorder %s77, %s78
      %p90 = scmp.eq.s32.totalorder %s21, 1
      %p91 = por %p89, %p90
      %p93 = scmp.ne.s32.totalorder %s78, %s92
      %p94 = scmp.eq.s32.totalorder %s21, 0
      %p95 = por %p93, %p94
      %s97 = sadd.s32 %s96, 1
      %p100 = scmp.eq.s32.totalorder %s15, 1
      %p101 = scmp.ne.s32.totalorder %s96, %s98
      %p102 = scmp.eq.s32.totalorder %s15, 0
      %p103 = por %p101, %p102
      %p104 = scmp.ne.s32.totalorder %s96, %s98
      %p105 = scmp.eq.s32.totalorder %s20, 1
      %p106 = por %p104, %p105
      %p107 = scmp.ne.s32.totalorder %s98, %s99
      %p108 = scmp.eq.s32.totalorder %s20, 0
      %p109 = por %p107, %p108
      %p110 = scmp.ne.s32.totalorder %s98, %s99
      %p111 = scmp.eq.s32.totalorder %s21, 1
      %p112 = por %p110, %p111
      %p114 = scmp.ne.s32.totalorder %s99, %s113
      %p115 = scmp.eq.s32.totalorder %s21, 0
      %p116 = por %p114, %p115
      %s118 = sadd.s32 %s117, 1
      %p121 = scmp.eq.s32.totalorder %s15, 1
      %p122 = scmp.ne.s32.totalorder %s117, %s119
      %p123 = scmp.eq.s32.totalorder %s15, 0
      %p124 = por %p122, %p123
      %p125 = scmp.ne.s32.totalorder %s117, %s119
      %p126 = scmp.eq.s32.totalorder %s20, 1
      %p127 = por %p125, %p126
      %p128 = scmp.ne.s32.totalorder %s119, %s120
      %p129 = scmp.eq.s32.totalorder %s20, 0
      %p130 = por %p128, %p129
      %p131 = scmp.ne.s32.totalorder %s119, %s120
      %p132 = scmp.eq.s32.totalorder %s21, 1
      %p133 = por %p131, %p132
      %p135 = scmp.ne.s32.totalorder %s120, %s134
      %p136 = scmp.eq.s32.totalorder %s21, 0
      %p137 = por %p135, %p136
      %s139 = sadd.s32 %s138, 1
      %p142 = scmp.eq.s32.totalorder %s15, 1
      %p143 = scmp.ne.s32.totalorder %s138, %s140
      %p144 = scmp.eq.s32.totalorder %s15, 0
      %p145 = por %p143, %p144
      %p146 = scmp.ne.s32.totalorder %s138, %s140
      %p147 = scmp.eq.s32.totalorder %s20, 1
      %p148 = por %p146, %p147
      %p149 = scmp.ne.s32.totalorder %s140, %s141
      %p150 = scmp.eq.s32.totalorder %s20, 0
      %p151 = por %p149, %p150
      %p152 = scmp.ne.s32.totalorder %s140, %s141
      %p153 = scmp.eq.s32.totalorder %s21, 1
      %p154 = por %p152, %p153
      %p156 = scmp.ne.s32.totalorder %s141, %s155
      %p157 = scmp.eq.s32.totalorder %s21, 0
      %p158 = por %p156, %p157
      %s159 = ssub.s32 %s15, %s22
      %p160 = scmp.eq.s32.totalorder %s159, 0
      %s162 = sadd.s32 %s161, 1
      %s163 = scalar_select %p160, %s161, %s162
      %p166 = pneg %p160
      %p167 = scmp.eq.s32.totalorder %s15, 1
      %p168 = por %p166, %p167
      %p169 = scmp.ne.s32.totalorder %s161, %s164
      %p170 = scmp.eq.s32.totalorder %s15, 0
      %p171 = por %p169, %p170
      %p172 = scmp.ne.s32.totalorder %s161, %s164
      %p173 = scmp.eq.s32.totalorder %s20, 1
      %p174 = por %p172, %p173
      %p175 = scmp.ne.s32.totalorder %s164, %s165
      %p176 = scmp.eq.s32.totalorder %s20, 0
      %p177 = por %p175, %p176
      %p178 = scmp.ne.s32.totalorder %s164, %s165
      %p179 = scmp.eq.s32.totalorder %s21, 1
      %p180 = por %p178, %p179
      %p182 = scmp.ne.s32.totalorder %s165, %s181
      %p183 = scmp.eq.s32.totalorder %s21, 0
      %p184 = por %p182, %p183
      %p185 = scmp.le.s32.totalorder 1, %s15
      %p186 = scmp.lt.s32.totalorder %s15, 3
      %p187 = pnand %p185, %p186
      %p188 = pneg %p187
      // Predicated region
      $region9: #{msa_transition.1} parent=5 // pred_check
        _
      $region10: #{msa_transition.1} parent=5 // pred_check_branch
        %190 = sbr.rel (%p187) target = $region12
      $region11: #{msa_transition.1} parent=5 // pred_region
        %s191 = ssub.s32 %s15, 1
        // Predicated region
        $region13: #{msa_transition.1} parent=11 // pred_check
          %p192 = pneg %p88
        $region14: #{msa_transition.1} parent=11 // pred_check_branch
          %194 = sbr.rel (%p192) target = $region16
        $region15: #{msa_transition.1} parent=11 // pred_region
          _
        $region16: #{msa_transition.1} parent=11 // pred_fallthru
          _
        // Predicated region
        $region17: #{msa_transition.1} parent=11 // pred_check
          %p195 = pneg %p109
        $region18: #{msa_transition.1} parent=11 // pred_check_branch
          %197 = sbr.rel (%p195) target = $region20
        $region19: #{msa_transition.1} parent=11 // pred_region
          _
        $region20: #{msa_transition.1} parent=11 // pred_fallthru
          _
        // Predicated region
        $region21: #{msa_transition.1} parent=11 // pred_check
          %p198 = pneg %p130
        $region22: #{msa_transition.1} parent=11 // pred_check_branch
          %200 = sbr.rel (%p198) target = $region24
        $region23: #{msa_transition.1} parent=11 // pred_region
          _
        $region24: #{msa_transition.1} parent=11 // pred_fallthru
          _
        // Predicated region
        $region25: #{msa_transition.1} parent=11 // pred_check
          %p201 = pneg %p151
        $region26: #{msa_transition.1} parent=11 // pred_check_branch
          %203 = sbr.rel (%p201) target = $region28
        $region27: #{msa_transition.1} parent=11 // pred_region
          _
        $region28: #{msa_transition.1} parent=11 // pred_fallthru
          _
      $region12: #{msa_transition.1} parent=5 // pred_fallthru
        _
      %p204 = scmp.lt.s32.totalorder %s15, 2
      // Predicated region
      $region29: #{msa_transition.1} parent=5 // pred_check
        %p205 = pneg %p204
      $region30: #{msa_transition.1} parent=5 // pred_check_branch
        %207 = sbr.rel (%p205) target = $region32
      $region31: #{msa_transition.1} parent=5 // pred_region
        // Predicated region
        $region33: #{msa_transition.1} parent=31 // pred_check
          %p208 = pneg %p35
        $region34: #{msa_transition.1} parent=31 // pred_check_branch
          %210 = sbr.rel (%p208) target = $region36
        $region35: #{msa_transition.1} parent=31 // pred_region
          %s211 = smul.u32 16, %s15
          %p212 = scmp.lt.s32.totalorder %s211, 31
          %s213 = scalar_select %p212, %s211, 31
          %s214 = smul.addr %s213, 8
          %s215 = scalar_lea.vmem %s0, %s214
          %s216 = smul.u32 16, %s15
        $region36: #{msa_transition.1} parent=31 // pred_fallthru
          _
        // Predicated region
        $region37: #{msa_transition.1} parent=31 // pred_check
          %p217 = pneg %p61
        $region38: #{msa_transition.1} parent=31 // pred_check_branch
          %219 = sbr.rel (%p217) target = $region40
        $region39: #{msa_transition.1} parent=31 // pred_region
          %s220 = smul.u32 16, %s15
          %p221 = scmp.lt.s32.totalorder %s220, 31
          %s222 = scalar_select %p221, %s220, 31
          %s223 = smul.addr %s222, 4
          %s224 = scalar_lea.vmem %s1, %s223
          %s225 = smul.u32 16, %s15
        $region40: #{msa_transition.1} parent=31 // pred_fallthru
          _
      $region32: #{msa_transition.1} parent=5 // pred_fallthru
        _
      %p226 = scmp.le.s32.totalorder 1, %s15
      %p227 = scmp.lt.s32.totalorder %s15, 3
      %p228 = pnand %p226, %p227
      %p229 = pneg %p228
      // Predicated region
      $region41: #{msa_transition.1} parent=5 // pred_check
        _
      $region42: #{msa_transition.1} parent=5 // pred_check_branch
        %231 = sbr.rel (%p228) target = $region44
      $region43: #{msa_transition.1} parent=5 // pred_region
        %s232 = ssub.s32 %s15, 1
        %s233 = smul.u32 16, %s20
        %p234 = scmp.lt.s32.totalorder %s233, 31
        %s235 = scalar_select %p234, %s233, 31
        %s236 = smul.addr %s235, 8
        %s237 = scalar_lea.vmem %s0, %s236
        %p238 = pneg %p41
        %p239 = pneg %p38
        %s240 = smul.u32 16, %s20
        %p241 = scmp.lt.s32.totalorder %s240, 31
        %s242 = scalar_select %p241, %s240, 31
        %s243 = smul.addr %s242, 4
        %s244 = scalar_lea.vmem %s1, %s243
        %p245 = pneg %p67
        %p246 = pneg %p64
        %p247 = pneg %p88
        %p248 = pneg %p85
        %p249 = pneg %p109
        %p250 = pneg %p106
        %p251 = pneg %p130
        %p252 = pneg %p127
        %p253 = pneg %p151
        %p254 = pneg %p148
        %p255 = pneg %p177
        %p256 = pneg %p174
        %s257 = sand.u32 %s164, 1
        %s258 = scalar_lea.sflag [#allocation3], %s257
        %s259 = sand.u32 %s164, 1
        %s260 = smul.addr %s259, 128
        %s261 = scalar_lea.vmem [#allocation2], %s260
        %s262 = smul.u32 16, %s20
        %p263 = scmp.lt.s32.totalorder %s262, 31
        %s264 = scalar_select %p263, %s262, 31
        %s265 = smul.addr %s264, 8
        %s266 = scalar_lea.vmem %s0, %s265
        %s267 = smul.u32 16, %s20
        %s268 = smul.u32 16, %s20
        %p269 = scmp.lt.s32.totalorder %s268, 31
        %s270 = scalar_select %p269, %s268, 31
        %s271 = smul.addr %s270, 4
        %s272 = scalar_lea.vmem %s1, %s271
        %s273 = smul.u32 16, %s20
        %s274 = smul.u32 16, %s20
        %v276 = vld [vmem:[%s266] sm:$0xff]
        %v277 = vld [vmem:[%s266 + $0x8] sm:$0xff]
        %v278 = vld [vmem:[%s266 + $0x10] sm:$0xff]
        %v279 = vld [vmem:[%s266 + $0x18] sm:$0xff]
        %v280 = vld [vmem:[%s266 + $0x20] sm:$0xff]
        %v281 = vld [vmem:[%s266 + $0x28] sm:$0xff]
        %v282 = vld [vmem:[%s266 + $0x30] sm:$0xff]
        %v283 = vld [vmem:[%s266 + $0x38] sm:$0xff]
        %v284 = vld [vmem:[%s266 + $0x40] sm:$0xff]
        %v285 = vld [vmem:[%s266 + $0x48] sm:$0xff]
        %v286 = vld [vmem:[%s266 + $0x50] sm:$0xff]
        %v287 = vld [vmem:[%s266 + $0x58] sm:$0xff]
        %v288 = vld [vmem:[%s266 + $0x60] sm:$0xff]
        %v289 = vld [vmem:[%s266 + $0x68] sm:$0xff]
        %v290 = vld [vmem:[%s266 + $0x70] sm:$0xff]
        %v291 = vld [vmem:[%s266 + $0x78] sm:$0xff]
        %vm292 = vcmask 261120
        %v293 = vsel %vm292, %v276, 0.0
        %294 = vadd.xlane.f32.xlu0 %v293
        %v295 = vpop.xlane.xlu0 %294
        %v296 = vsel %vm292, %v277, 0.0
        %297 = vadd.xlane.f32.xlu0 %v296
        %v298 = vpop.xlane.xlu0 %297
        %v299 = vsel %vm292, %v278, 0.0
        %300 = vadd.xlane.f32.xlu0 %v299
        %v301 = vpop.xlane.xlu0 %300
        %v302 = vsel %vm292, %v279, 0.0
        %303 = vadd.xlane.f32.xlu0 %v302
        %v304 = vpop.xlane.xlu0 %303
        %v305 = vsel %vm292, %v280, 0.0
        %306 = vadd.xlane.f32.xlu0 %v305
        %v307 = vpop.xlane.xlu0 %306
        %v308 = vsel %vm292, %v281, 0.0
        %309 = vadd.xlane.f32.xlu0 %v308
        %v310 = vpop.xlane.xlu0 %309
        %v311 = vsel %vm292, %v282, 0.0
        %312 = vadd.xlane.f32.xlu0 %v311
        %v313 = vpop.xlane.xlu0 %312
        %v314 = vsel %vm292, %v283, 0.0
        %315 = vadd.xlane.f32.xlu0 %v314
        %v316 = vpop.xlane.xlu0 %315
        %v317 = vsel %vm292, %v284, 0.0
        %318 = vadd.xlane.f32.xlu0 %v317
        %v319 = vpop.xlane.xlu0 %318
        %v320 = vsel %vm292, %v285, 0.0
        %321 = vadd.xlane.f32.xlu0 %v320
        %v322 = vpop.xlane.xlu0 %321
        %v323 = vsel %vm292, %v286, 0.0
        %324 = vadd.xlane.f32.xlu0 %v323
        %v325 = vpop.xlane.xlu0 %324
        %v326 = vsel %vm292, %v287, 0.0
        %327 = vadd.xlane.f32.xlu0 %v326
        %v328 = vpop.xlane.xlu0 %327
        %v329 = vsel %vm292, %v288, 0.0
        %330 = vadd.xlane.f32.xlu0 %v329
        %v331 = vpop.xlane.xlu0 %330
        %v332 = vsel %vm292, %v289, 0.0
        %333 = vadd.xlane.f32.xlu0 %v332
        %v334 = vpop.xlane.xlu0 %333
        %v335 = vsel %vm292, %v290, 0.0
        %336 = vadd.xlane.f32.xlu0 %v335
        %v337 = vpop.xlane.xlu0 %336
        %v338 = vsel %vm292, %v291, 0.0
        %339 = vadd.xlane.f32.xlu0 %v338
        %v340 = vpop.xlane.xlu0 %339
        %v341 = vmul.f32 %v295, 0.03125
        %v342 = vmul.f32 %v298, 0.03125
        %v343 = vmul.f32 %v301, 0.03125
        %v344 = vmul.f32 %v304, 0.03125
        %v345 = vmul.f32 %v307, 0.03125
        %v346 = vmul.f32 %v310, 0.03125
        %v347 = vmul.f32 %v313, 0.03125
        %v348 = vmul.f32 %v316, 0.03125
        %v349 = vmul.f32 %v319, 0.03125
        %v350 = vmul.f32 %v322, 0.03125
        %v351 = vmul.f32 %v325, 0.03125
        %v352 = vmul.f32 %v328, 0.03125
        %v353 = vmul.f32 %v331, 0.03125
        %v354 = vmul.f32 %v334, 0.03125
        %v355 = vmul.f32 %v337, 0.03125
        %v356 = vmul.f32 %v340, 0.03125
        %v357 = vmul.f32 %v276, %v276
        %v358 = vmul.f32 %v277, %v277
        %v359 = vmul.f32 %v278, %v278
        %v360 = vmul.f32 %v279, %v279
        %v361 = vmul.f32 %v280, %v280
        %v362 = vmul.f32 %v281, %v281
        %v363 = vmul.f32 %v282, %v282
        %v364 = vmul.f32 %v283, %v283
        %v365 = vmul.f32 %v284, %v284
        %v366 = vmul.f32 %v285, %v285
        %v367 = vmul.f32 %v286, %v286
        %v368 = vmul.f32 %v287, %v287
        %v369 = vmul.f32 %v288, %v288
        %v370 = vmul.f32 %v289, %v289
        %v371 = vmul.f32 %v290, %v290
        %v372 = vmul.f32 %v291, %v291
        %v373 = vsel %vm292, %v357, 0.0
        %374 = vadd.xlane.f32.xlu0 %v373
        %v375 = vpop.xlane.xlu0 %374
        %v376 = vsel %vm292, %v358, 0.0
        %377 = vadd.xlane.f32.xlu0 %v376
        %v378 = vpop.xlane.xlu0 %377
        %v379 = vsel %vm292, %v359, 0.0
        %380 = vadd.xlane.f32.xlu0 %v379
        %v381 = vpop.xlane.xlu0 %380
        %v382 = vsel %vm292, %v360, 0.0
        %383 = vadd.xlane.f32.xlu0 %v382
        %v384 = vpop.xlane.xlu0 %383
        %v385 = vsel %vm292, %v361, 0.0
        %386 = vadd.xlane.f32.xlu0 %v385
        %v387 = vpop.xlane.xlu0 %386
        %v388 = vsel %vm292, %v362, 0.0
        %389 = vadd.xlane.f32.xlu0 %v388
        %v390 = vpop.xlane.xlu0 %389
        %v391 = vsel %vm292, %v363, 0.0
        %392 = vadd.xlane.f32.xlu0 %v391
        %v393 = vpop.xlane.xlu0 %392
        %v394 = vsel %vm292, %v364, 0.0
        %395 = vadd.xlane.f32.xlu0 %v394
        %v396 = vpop.xlane.xlu0 %395
        %v397 = vsel %vm292, %v365, 0.0
        %398 = vadd.xlane.f32.xlu0 %v397
        %v399 = vpop.xlane.xlu0 %398
        %v400 = vsel %vm292, %v366, 0.0
        %401 = vadd.xlane.f32.xlu0 %v400
        %v402 = vpop.xlane.xlu0 %401
        %v403 = vsel %vm292, %v367, 0.0
        %404 = vadd.xlane.f32.xlu0 %v403
        %v405 = vpop.xlane.xlu0 %404
        %v406 = vsel %vm292, %v368, 0.0
        %407 = vadd.xlane.f32.xlu0 %v406
        %v408 = vpop.xlane.xlu0 %407
        %v409 = vsel %vm292, %v369, 0.0
        %410 = vadd.xlane.f32.xlu0 %v409
        %v411 = vpop.xlane.xlu0 %410
        %v412 = vsel %vm292, %v370, 0.0
        %413 = vadd.xlane.f32.xlu0 %v412
        %v414 = vpop.xlane.xlu0 %413
        %v415 = vsel %vm292, %v371, 0.0
        %416 = vadd.xlane.f32.xlu0 %v415
        %v417 = vpop.xlane.xlu0 %416
        %v418 = vsel %vm292, %v372, 0.0
        %419 = vadd.xlane.f32.xlu0 %v418
        %v420 = vpop.xlane.xlu0 %419
        %v421 = vmul.f32 %v375, 0.03125
        %v422 = vmul.f32 %v378, 0.03125
        %v423 = vmul.f32 %v381, 0.03125
        %v424 = vmul.f32 %v384, 0.03125
        %v425 = vmul.f32 %v387, 0.03125
        %v426 = vmul.f32 %v390, 0.03125
        %v427 = vmul.f32 %v393, 0.03125
        %v428 = vmul.f32 %v396, 0.03125
        %v429 = vmul.f32 %v399, 0.03125
        %v430 = vmul.f32 %v402, 0.03125
        %v431 = vmul.f32 %v405, 0.03125
        %v432 = vmul.f32 %v408, 0.03125
        %v433 = vmul.f32 %v411, 0.03125
        %v434 = vmul.f32 %v414, 0.03125
        %v435 = vmul.f32 %v417, 0.03125
        %v436 = vmul.f32 %v420, 0.03125
        %v437 = vmul.f32 %v341, %v341
        %v438 = vmul.f32 %v342, %v342
        %v439 = vmul.f32 %v343, %v343
        %v440 = vmul.f32 %v344, %v344
        %v441 = vmul.f32 %v345, %v345
        %v442 = vmul.f32 %v346, %v346
        %v443 = vmul.f32 %v347, %v347
        %v444 = vmul.f32 %v348, %v348
        %v445 = vmul.f32 %v349, %v349
        %v446 = vmul.f32 %v350, %v350
        %v447 = vmul.f32 %v351, %v351
        %v448 = vmul.f32 %v352, %v352
        %v449 = vmul.f32 %v353, %v353
        %v450 = vmul.f32 %v354, %v354
        %v451 = vmul.f32 %v355, %v355
        %v452 = vmul.f32 %v356, %v356
        %v453 = vsub.f32 %v421, %v437
        %v454 = vsub.f32 %v422, %v438
        %v455 = vsub.f32 %v423, %v439
        %v456 = vsub.f32 %v424, %v440
        %v457 = vsub.f32 %v425, %v441
        %v458 = vsub.f32 %v426, %v442
        %v459 = vsub.f32 %v427, %v443
        %v460 = vsub.f32 %v428, %v444
        %v461 = vsub.f32 %v429, %v445
        %v462 = vsub.f32 %v430, %v446
        %v463 = vsub.f32 %v431, %v447
        %v464 = vsub.f32 %v432, %v448
        %v465 = vsub.f32 %v433, %v449
        %v466 = vsub.f32 %v434, %v450
        %v467 = vsub.f32 %v435, %v451
        %v468 = vsub.f32 %v436, %v452
        %v469 = vmax.f32 %v453, 0.0
        %v470 = vmax.f32 %v454, 0.0
        %v471 = vmax.f32 %v455, 0.0
        %v472 = vmax.f32 %v456, 0.0
        %v473 = vmax.f32 %v457, 0.0
        %v474 = vmax.f32 %v458, 0.0
        %v475 = vmax.f32 %v459, 0.0
        %v476 = vmax.f32 %v460, 0.0
        %v477 = vmax.f32 %v461, 0.0
        %v478 = vmax.f32 %v462, 0.0
        %v479 = vmax.f32 %v463, 0.0
        %v480 = vmax.f32 %v464, 0.0
        %v481 = vmax.f32 %v465, 0.0
        %v482 = vmax.f32 %v466, 0.0
        %v483 = vmax.f32 %v467, 0.0
        %v484 = vmax.f32 %v468, 0.0
        %v485 = vsub.f32 %v276, %v341
        %v486 = vsub.f32 %v277, %v342
        %v487 = vsub.f32 %v278, %v343
        %v488 = vsub.f32 %v279, %v344
        %v489 = vsub.f32 %v280, %v345
        %v490 = vsub.f32 %v281, %v346
        %v491 = vsub.f32 %v282, %v347
        %v492 = vsub.f32 %v283, %v348
        %v493 = vsub.f32 %v284, %v349
        %v494 = vsub.f32 %v285, %v350
        %v495 = vsub.f32 %v286, %v351
        %v496 = vsub.f32 %v287, %v352
        %v497 = vsub.f32 %v288, %v353
        %v498 = vsub.f32 %v289, %v354
        %v499 = vsub.f32 %v290, %v355
        %v500 = vsub.f32 %v291, %v356
        %v501 = vadd.f32 %v469, 1e-05
        %v502 = vadd.f32 %v470, 1e-05
        %v503 = vadd.f32 %v471, 1e-05
        %v504 = vadd.f32 %v472, 1e-05
        %v505 = vadd.f32 %v473, 1e-05
        %v506 = vadd.f32 %v474, 1e-05
        %v507 = vadd.f32 %v475, 1e-05
        %v508 = vadd.f32 %v476, 1e-05
        %v509 = vadd.f32 %v477, 1e-05
        %v510 = vadd.f32 %v478, 1e-05
        %v511 = vadd.f32 %v479, 1e-05
        %v512 = vadd.f32 %v480, 1e-05
        %v513 = vadd.f32 %v481, 1e-05
        %v514 = vadd.f32 %v482, 1e-05
        %v515 = vadd.f32 %v483, 1e-05
        %v516 = vadd.f32 %v484, 1e-05
        %v517 = vrsqrt.pop %v501
        %v518 = vrsqrt.pop %v502
        %v519 = vrsqrt.pop %v503
        %v520 = vrsqrt.pop %v504
        %v521 = vrsqrt.pop %v505
        %v522 = vrsqrt.pop %v506
        %v523 = vrsqrt.pop %v507
        %v524 = vrsqrt.pop %v508
        %v525 = vrsqrt.pop %v509
        %v526 = vrsqrt.pop %v510
        %v527 = vrsqrt.pop %v511
        %v528 = vrsqrt.pop %v512
        %v529 = vrsqrt.pop %v513
        %v530 = vrsqrt.pop %v514
        %v531 = vrsqrt.pop %v515
        %v532 = vrsqrt.pop %v516
        %v533 = vmul.f32 %v485, %v517
        %v534 = vmul.f32 %v486, %v518
        %v535 = vmul.f32 %v487, %v519
        %v536 = vmul.f32 %v488, %v520
        %v537 = vmul.f32 %v489, %v521
        %v538 = vmul.f32 %v490, %v522
        %v539 = vmul.f32 %v491, %v523
        %v540 = vmul.f32 %v492, %v524
        %v541 = vmul.f32 %v493, %v525
        %v542 = vmul.f32 %v494, %v526
        %v543 = vmul.f32 %v495, %v527
        %v544 = vmul.f32 %v496, %v528
        %v545 = vmul.f32 %v497, %v529
        %v546 = vmul.f32 %v498, %v530
        %v547 = vmul.f32 %v499, %v531
        %v548 = vmul.f32 %v500, %v532
        %v549 = vpack.c.bf16 %v534, %v533
        %v550 = vpack.c.bf16 %v536, %v535
        %v551 = vpack.c.bf16 %v538, %v537
        %v552 = vpack.c.bf16 %v540, %v539
        %v553 = vpack.c.bf16 %v542, %v541
        %v554 = vpack.c.bf16 %v544, %v543
        %v555 = vpack.c.bf16 %v546, %v545
        %v556 = vpack.c.bf16 %v548, %v547
        %v557 = vld [vmem:[%s2] sm:$0xf]
        %v558 = vld [vmem:[%s2 + $0x4] sm:$0xf]
        %v559 = vld [vmem:[%s2 + $0x8] sm:$0xf]
        %v560 = vld [vmem:[%s2 + $0xc] sm:$0xf]
        %v561 = vld [vmem:[%s3] sm:$0x1]
        %v563 = vlaneseq
        %v564 = vshrl.u32 %v563, 7
        %v565 = vsub.s32 0, %v564
        %v566 = vrot.slane %v561, %v565
        %v572 = vunpack.c.l.b16 %v557
        %v573 = vunpack.c.l.b16 %v558
        %v574 = vunpack.c.l.b16 %v559
        %v575 = vunpack.c.l.b16 %v560
        %v576 = vpack.c.b16 %v573, %v572
        %v577 = vpack.c.b16 %v575, %v574
        %v581 = vsel %vm292, %v549, 0
        %v584 = vsel %vm292, %v550, 0
        %v587 = vsel %vm292, %v551, 0
        %v590 = vsel %vm292, %v552, 0
        %v593 = vsel %vm292, %v553, 0
        %v596 = vsel %vm292, %v554, 0
        %v599 = vsel %vm292, %v555, 0
        %v602 = vsel %vm292, %v556, 0
        %604 = vmatprep.subr.bf16.mxu0 0
        %605 = vmatpush1.bf16.msra.mxu0 %v576
        %606 = vmatprep.subr.bf16.mxu0 0
        %607 = vmatpush1.bf16.msra.mxu0 %v577
        %608 = vmatprep.subr.bf16.mxu0 0
        %609 = vmatpush1.bf16.msra.mxu0 0
        %610 = vmatprep.subr.bf16.mxu0 0
        %611 = vmatpush1.bf16.msra.mxu0 0
        %612 = vmatprep.subr.bf16.mxu0 0
        %613 = vmatpush1.bf16.msra.mxu0 0
        %614 = vmatprep.subr.bf16.mxu0 0
        %615 = vmatpush1.bf16.msra.mxu0 0
        %616 = vmatprep.subr.bf16.mxu0 0
        %617 = vmatpush1.bf16.msra.mxu0 0
        %618 = vmatprep.subr.bf16.mxu0 0
        %619 = vmatpush1.bf16.msra.mxu0 0
        %620 = vmatprep.subr.bf16.mxu0 0
        %621 = vmatpush1.bf16.msra.mxu0 0
        %622 = vmatprep.subr.bf16.mxu0 0
        %623 = vmatpush1.bf16.msra.mxu0 0
        %624 = vmatprep.subr.bf16.mxu0 0
        %625 = vmatpush1.bf16.msra.mxu0 0
        %626 = vmatprep.subr.bf16.mxu0 0
        %627 = vmatpush1.bf16.msra.mxu0 0
        %628 = vmatprep.subr.bf16.mxu0 0
        %629 = vmatpush1.bf16.msra.mxu0 0
        %630 = vmatprep.subr.bf16.mxu0 0
        %631 = vmatpush1.bf16.msra.mxu0 0
        %632 = vmatprep.subr.bf16.mxu0 0
        %633 = vmatpush1.bf16.msra.mxu0 0
        %634 = vmatprep.subr.bf16.mxu0 0
        %635 = vmatpush1.bf16.msra.mxu0 0
        %636 = vmatprep.mubr.bf16.mxu0 0
        %637 = vmatmul.mubr.bf16.gmra.mrb[0].mxu0 %v581
        %v638 = vpop.f32.mrb[0].mxu0
        %v639 = vadd.f32 %v566, %v638
        %v640 = vpop.f32.mrb[0].mxu0
        %v641 = vpop.f32.mrb[0].mxu0
        %v642 = vadd.f32 %v566, %v641
        %v643 = vpop.f32.mrb[0].mxu0
        %644 = vmatprep.mubr.bf16.mxu0 0
        %645 = vmatmul.mubr.bf16.gmra.mrb[0].mxu0 %v584
        %v646 = vpop.f32.mrb[0].mxu0
        %v647 = vadd.f32 %v566, %v646
        %v648 = vpop.f32.mrb[0].mxu0
        %v649 = vpop.f32.mrb[0].mxu0
        %v650 = vadd.f32 %v566, %v649
        %v651 = vpop.f32.mrb[0].mxu0
        %652 = vmatprep.mubr.bf16.mxu0 0
        %653 = vmatmul.mubr.bf16.gmra.mrb[0].mxu0 %v587
        %v654 = vpop.f32.mrb[0].mxu0
        %v655 = vadd.f32 %v566, %v654
        %v656 = vpop.f32.mrb[0].mxu0
        %v657 = vpop.f32.mrb[0].mxu0
        %v658 = vadd.f32 %v566, %v657
        %v659 = vpop.f32.mrb[0].mxu0
        %660 = vmatprep.mubr.bf16.mxu0 0
        %661 = vmatmul.mubr.bf16.gmra.mrb[0].mxu0 %v590
        %v662 = vpop.f32.mrb[0].mxu0
        %v663 = vadd.f32 %v566, %v662
        %v664 = vpop.f32.mrb[0].mxu0
        %v665 = vpop.f32.mrb[0].mxu0
        %v666 = vadd.f32 %v566, %v665
        %v667 = vpop.f32.mrb[0].mxu0
        %668 = vmatprep.mubr.bf16.mxu0 0
        %669 = vmatmul.mubr.bf16.gmra.mrb[0].mxu0 %v593
        %v670 = vpop.f32.mrb[0].mxu0
        %v671 = vadd.f32 %v566, %v670
        %v672 = vpop.f32.mrb[0].mxu0
        %v673 = vpop.f32.mrb[0].mxu0
        %v674 = vadd.f32 %v566, %v673
        %v675 = vpop.f32.mrb[0].mxu0
        %676 = vmatprep.mubr.bf16.mxu0 0
        %677 = vmatmul.mubr.bf16.gmra.mrb[0].mxu0 %v596
        %v678 = vpop.f32.mrb[0].mxu0
        %v679 = vadd.f32 %v566, %v678
        %v680 = vpop.f32.mrb[0].mxu0
        %v681 = vpop.f32.mrb[0].mxu0
        %v682 = vadd.f32 %v566, %v681
        %v683 = vpop.f32.mrb[0].mxu0
        %684 = vmatprep.mubr.bf16.mxu0 0
        %685 = vmatmul.mubr.bf16.gmra.mrb[0].mxu0 %v599
        %v686 = vpop.f32.mrb[0].mxu0
        %v687 = vadd.f32 %v566, %v686
        %v688 = vpop.f32.mrb[0].mxu0
        %v689 = vpop.f32.mrb[0].mxu0
        %v690 = vadd.f32 %v566, %v689
        %v691 = vpop.f32.mrb[0].mxu0
        %692 = vmatprep.mubr.bf16.mxu0 0
        %693 = vmatmul.mubr.bf16.gmra.mrb[0].mxu0 %v602
        %v694 = vpop.f32.mrb[0].mxu0
        %v695 = vadd.f32 %v566, %v694
        %v696 = vpop.f32.mrb[0].mxu0
        %v697 = vpop.f32.mrb[0].mxu0
        %v698 = vadd.f32 %v566, %v697
        %v699 = vpop.f32.mrb[0].mxu0
        %700 = vdwg.mxu0
        %v701 = vmax.f32 %v639, 0.0
        %v702 = vmax.f32 %v642, 0.0
        %v703 = vmax.f32 %v647, 0.0
        %v704 = vmax.f32 %v650, 0.0
        %v705 = vmax.f32 %v655, 0.0
        %v706 = vmax.f32 %v658, 0.0
        %v707 = vmax.f32 %v663, 0.0
        %v708 = vmax.f32 %v666, 0.0
        %v709 = vmax.f32 %v671, 0.0
        %v710 = vmax.f32 %v674, 0.0
        %v711 = vmax.f32 %v679, 0.0
        %v712 = vmax.f32 %v682, 0.0
        %v713 = vmax.f32 %v687, 0.0
        %v714 = vmax.f32 %v690, 0.0
        %v715 = vmax.f32 %v695, 0.0
        %v716 = vmax.f32 %v698, 0.0
        %v717 = vpack.c.bf16 %v702, %v701
        %v718 = vpack.c.bf16 %v704, %v703
        %v719 = vpack.c.bf16 %v706, %v705
        %v720 = vpack.c.bf16 %v708, %v707
        %v721 = vpack.c.bf16 %v710, %v709
        %v722 = vpack.c.bf16 %v712, %v711
        %v723 = vpack.c.bf16 %v714, %v713
        %v724 = vpack.c.bf16 %v716, %v715
        %v725 = vld [vmem:[%s4] sm:$0xf]
        %v726 = vld [vmem:[%s4 + $0x4] sm:$0xf]
        %v727 = vld [vmem:[%s4 + $0x8] sm:$0xf]
        %v728 = vld [vmem:[%s4 + $0xc] sm:$0xf]
        %v729 = vld [vmem:[%s4 + $0x10] sm:$0xf]
        %v730 = vld [vmem:[%s4 + $0x14] sm:$0xf]
        %v731 = vld [vmem:[%s4 + $0x18] sm:$0xf]
        %v732 = vld [vmem:[%s4 + $0x1c] sm:$0xf]
        %v733 = vld [vmem:[%s4 + $0x20] sm:$0xf]
        %v734 = vld [vmem:[%s4 + $0x24] sm:$0xf]
        %v735 = vld [vmem:[%s4 + $0x28] sm:$0xf]
        %v736 = vld [vmem:[%s4 + $0x2c] sm:$0xf]
        %v737 = vld [vmem:[%s4 + $0x30] sm:$0xf]
        %v738 = vld [vmem:[%s4 + $0x34] sm:$0xf]
        %v739 = vld [vmem:[%s4 + $0x38] sm:$0xf]
        %v740 = vld [vmem:[%s4 + $0x3c] sm:$0xf]
        %v741 = vld [vmem:[%s5] sm:$0x1]
        %v743 = vlaneseq
        %v744 = vshrl.u32 %v743, 7
        %v745 = vsub.s32 0, %v744
        %v746 = vrot.slane %v741, %v745
        %v764 = vunpack.c.l.b16 %v725
        %v765 = vunpack.c.l.b16 %v726
        %v766 = vunpack.c.l.b16 %v727
        %v767 = vunpack.c.l.b16 %v728
        %v768 = vunpack.c.l.b16 %v729
        %v769 = vunpack.c.l.b16 %v730
        %v770 = vunpack.c.l.b16 %v731
        %v771 = vunpack.c.l.b16 %v732
        %v772 = vunpack.c.l.b16 %v733
        %v773 = vunpack.c.l.b16 %v734
        %v774 = vunpack.c.l.b16 %v735
        %v775 = vunpack.c.l.b16 %v736
        %v776 = vunpack.c.l.b16 %v737
        %v777 = vunpack.c.l.b16 %v738
        %v778 = vunpack.c.l.b16 %v739
        %v779 = vunpack.c.l.b16 %v740
        %v780 = vpack.c.b16 %v765, %v764
        %v781 = vpack.c.b16 %v767, %v766
        %v782 = vpack.c.b16 %v769, %v768
        %v783 = vpack.c.b16 %v771, %v770
        %v784 = vpack.c.b16 %v773, %v772
        %v785 = vpack.c.b16 %v775, %v774
        %v786 = vpack.c.b16 %v777, %v776
        %v787 = vpack.c.b16 %v779, %v778
        %796 = vmatprep.subr.bf16.mxu0 0
        %797 = vmatpush1.bf16.msra.mxu0 %v780
        %798 = vmatprep.subr.bf16.mxu0 0
        %799 = vmatpush1.bf16.msra.mxu0 %v781
        %800 = vmatprep.subr.bf16.mxu0 0
        %801 = vmatpush1.bf16.msra.mxu0 %v782
        %802 = vmatprep.subr.bf16.mxu0 0
        %803 = vmatpush1.bf16.msra.mxu0 %v783
        %804 = vmatprep.subr.bf16.mxu0 0
        %805 = vmatpush1.bf16.msra.mxu0 %v784
        %806 = vmatprep.subr.bf16.mxu0 0
        %807 = vmatpush1.bf16.msra.mxu0 %v785
        %808 = vmatprep.subr.bf16.mxu0 0
        %809 = vmatpush1.bf16.msra.mxu0 %v786
        %810 = vmatprep.subr.bf16.mxu0 0
        %811 = vmatpush1.bf16.msra.mxu0 %v787
        %812 = vmatprep.subr.bf16.mxu0 0
        %813 = vmatpush1.bf16.msra.mxu0 0
        %814 = vmatprep.subr.bf16.mxu0 0
        %815 = vmatpush1.bf16.msra.mxu0 0
        %816 = vmatprep.subr.bf16.mxu0 0
        %817 = vmatpush1.bf16.msra.mxu0 0
        %818 = vmatprep.subr.bf16.mxu0 0
        %819 = vmatpush1.bf16.msra.mxu0 0
        %820 = vmatprep.subr.bf16.mxu0 0
        %821 = vmatpush1.bf16.msra.mxu0 0
        %822 = vmatprep.subr.bf16.mxu0 0
        %823 = vmatpush1.bf16.msra.mxu0 0
        %824 = vmatprep.subr.bf16.mxu0 0
        %825 = vmatpush1.bf16.msra.mxu0 0
        %826 = vmatprep.subr.bf16.mxu0 0
        %827 = vmatpush1.bf16.msra.mxu0 0
        %828 = vmatprep.mubr.bf16.mxu0 0
        %829 = vmatmul.mubr.bf16.gmra.mrb[0].mxu0 %v717
        %v830 = vpop.f32.mrb[0].mxu0
        %v831 = vadd.f32 %v746, %v830
        %v832 = vpop.f32.mrb[0].mxu0
        %v833 = vpop.f32.mrb[0].mxu0
        %v834 = vadd.f32 %v746, %v833
        %v835 = vpop.f32.mrb[0].mxu0
        %836 = vmatprep.mubr.bf16.mxu0 0
        %837 = vmatmul.mubr.bf16.gmra.mrb[0].mxu0 %v718
        %v838 = vpop.f32.mrb[0].mxu0
        %v839 = vadd.f32 %v746, %v838
        %v840 = vpop.f32.mrb[0].mxu0
        %v841 = vpop.f32.mrb[0].mxu0
        %v842 = vadd.f32 %v746, %v841
        %v843 = vpop.f32.mrb[0].mxu0
        %844 = vmatprep.mubr.bf16.mxu0 0
        %845 = vmatmul.mubr.bf16.gmra.mrb[0].mxu0 %v719
        %v846 = vpop.f32.mrb[0].mxu0
        %v847 = vadd.f32 %v746, %v846
        %v848 = vpop.f32.mrb[0].mxu0
        %v849 = vpop.f32.mrb[0].mxu0
        %v850 = vadd.f32 %v746, %v849
        %v851 = vpop.f32.mrb[0].mxu0
        %852 = vmatprep.mubr.bf16.mxu0 0
        %853 = vmatmul.mubr.bf16.gmra.mrb[0].mxu0 %v720
        %v854 = vpop.f32.mrb[0].mxu0
        %v855 = vadd.f32 %v746, %v854
        %v856 = vpop.f32.mrb[0].mxu0
        %v857 = vpop.f32.mrb[0].mxu0
        %v858 = vadd.f32 %v746, %v857
        %v859 = vpop.f32.mrb[0].mxu0
        %860 = vmatprep.mubr.bf16.mxu0 0
        %861 = vmatmul.mubr.bf16.gmra.mrb[0].mxu0 %v721
        %v862 = vpop.f32.mrb[0].mxu0
        %v863 = vadd.f32 %v746, %v862
        %v864 = vpop.f32.mrb[0].mxu0
        %v865 = vpop.f32.mrb[0].mxu0
        %v866 = vadd.f32 %v746, %v865
        %v867 = vpop.f32.mrb[0].mxu0
        %868 = vmatprep.mubr.bf16.mxu0 0
        %869 = vmatmul.mubr.bf16.gmra.mrb[0].mxu0 %v722
        %v870 = vpop.f32.mrb[0].mxu0
        %v871 = vadd.f32 %v746, %v870
        %v872 = vpop.f32.mrb[0].mxu0
        %v873 = vpop.f32.mrb[0].mxu0
        %v874 = vadd.f32 %v746, %v873
        %v875 = vpop.f32.mrb[0].mxu0
        %876 = vmatprep.mubr.bf16.mxu0 0
        %877 = vmatmul.mubr.bf16.gmra.mrb[0].mxu0 %v723
        %v878 = vpop.f32.mrb[0].mxu0
        %v879 = vadd.f32 %v746, %v878
        %v880 = vpop.f32.mrb[0].mxu0
        %v881 = vpop.f32.mrb[0].mxu0
        %v882 = vadd.f32 %v746, %v881
        %v883 = vpop.f32.mrb[0].mxu0
        %884 = vmatprep.mubr.bf16.mxu0 0
        %885 = vmatmul.mubr.bf16.gmra.mrb[0].mxu0 %v724
        %v886 = vpop.f32.mrb[0].mxu0
        %v887 = vadd.f32 %v746, %v886
        %v888 = vpop.f32.mrb[0].mxu0
        %v889 = vpop.f32.mrb[0].mxu0
        %v890 = vadd.f32 %v746, %v889
        %v891 = vpop.f32.mrb[0].mxu0
        %892 = vdwg.mxu0
        %v893 = vld [vmem:[%s272] sm:$0xf]
        %v894 = vld [vmem:[%s272 + $0x4] sm:$0xf]
        %v895 = vld [vmem:[%s272 + $0x8] sm:$0xf]
        %v896 = vld [vmem:[%s272 + $0xc] sm:$0xf]
        %v897 = vld [vmem:[%s272 + $0x10] sm:$0xf]
        %v898 = vld [vmem:[%s272 + $0x14] sm:$0xf]
        %v899 = vld [vmem:[%s272 + $0x18] sm:$0xf]
        %v900 = vld [vmem:[%s272 + $0x1c] sm:$0xf]
        %v901 = vld [vmem:[%s272 + $0x20] sm:$0xf]
        %v902 = vld [vmem:[%s272 + $0x24] sm:$0xf]
        %v903 = vld [vmem:[%s272 + $0x28] sm:$0xf]
        %v904 = vld [vmem:[%s272 + $0x2c] sm:$0xf]
        %v905 = vld [vmem:[%s272 + $0x30] sm:$0xf]
        %v906 = vld [vmem:[%s272 + $0x34] sm:$0xf]
        %v907 = vld [vmem:[%s272 + $0x38] sm:$0xf]
        %v908 = vld [vmem:[%s272 + $0x3c] sm:$0xf]
        %v909 = vunpack.c.l.bf16 %v893
        %v910 = vunpack.c.l.bf16 %v894
        %v911 = vunpack.c.l.bf16 %v895
        %v912 = vunpack.c.l.bf16 %v896
        %v913 = vunpack.c.l.bf16 %v897
        %v914 = vunpack.c.l.bf16 %v898
        %v915 = vunpack.c.l.bf16 %v899
        %v916 = vunpack.c.l.bf16 %v900
        %v917 = vunpack.c.l.bf16 %v901
        %v918 = vunpack.c.l.bf16 %v902
        %v919 = vunpack.c.l.bf16 %v903
        %v920 = vunpack.c.l.bf16 %v904
        %v921 = vunpack.c.l.bf16 %v905
        %v922 = vunpack.c.l.bf16 %v906
        %v923 = vunpack.c.l.bf16 %v907
        %v924 = vunpack.c.l.bf16 %v908
        %926 = vset.pattern.permute.xlu0 0
        %927 = vperm.xlu0 %926, %v909
        %v928 = vpop.permute.xlu0 %927
        %931 = vset.pattern.permute.xlu0 0
        %932 = vperm.xlu0 %931, %v910
        %v933 = vpop.permute.xlu0 %932
        %936 = vset.pattern.permute.xlu0 0
        %937 = vperm.xlu0 %936, %v911
        %v938 = vpop.permute.xlu0 %937
        %941 = vset.pattern.permute.xlu0 0
        %942 = vperm.xlu0 %941, %v912
        %v943 = vpop.permute.xlu0 %942
        %946 = vset.pattern.permute.xlu0 0
        %947 = vperm.xlu0 %946, %v913
        %v948 = vpop.permute.xlu0 %947
        %951 = vset.pattern.permute.xlu0 0
        %952 = vperm.xlu0 %951, %v914
        %v953 = vpop.permute.xlu0 %952
        %956 = vset.pattern.permute.xlu0 0
        %957 = vperm.xlu0 %956, %v915
        %v958 = vpop.permute.xlu0 %957
        %961 = vset.pattern.permute.xlu0 0
        %962 = vperm.xlu0 %961, %v916
        %v963 = vpop.permute.xlu0 %962
        %966 = vset.pattern.permute.xlu0 0
        %967 = vperm.xlu0 %966, %v917
        %v968 = vpop.permute.xlu0 %967
        %971 = vset.pattern.permute.xlu0 0
        %972 = vperm.xlu0 %971, %v918
        %v973 = vpop.permute.xlu0 %972
        %976 = vset.pattern.permute.xlu0 0
        %977 = vperm.xlu0 %976, %v919
        %v978 = vpop.permute.xlu0 %977
        %981 = vset.pattern.permute.xlu0 0
        %982 = vperm.xlu0 %981, %v920
        %v983 = vpop.permute.xlu0 %982
        %986 = vset.pattern.permute.xlu0 0
        %987 = vperm.xlu0 %986, %v921
        %v988 = vpop.permute.xlu0 %987
        %991 = vset.pattern.permute.xlu0 0
        %992 = vperm.xlu0 %991, %v922
        %v993 = vpop.permute.xlu0 %992
        %996 = vset.pattern.permute.xlu0 0
        %997 = vperm.xlu0 %996, %v923
        %v998 = vpop.permute.xlu0 %997
        %1001 = vset.pattern.permute.xlu0 0
        %1002 = vperm.xlu0 %1001, %v924
        %v1003 = vpop.permute.xlu0 %1002
        %v1005 = vmul.f32 %v831, %v928
        %v1006 = vmul.f32 %v834, %v933
        %v1007 = vmul.f32 %v839, %v938
        %v1008 = vmul.f32 %v842, %v943
        %v1009 = vmul.f32 %v847, %v948
        %v1010 = vmul.f32 %v850, %v953
        %v1011 = vmul.f32 %v855, %v958
        %v1012 = vmul.f32 %v858, %v963
        %v1013 = vmul.f32 %v863, %v968
        %v1014 = vmul.f32 %v866, %v973
        %v1015 = vmul.f32 %v871, %v978
        %v1016 = vmul.f32 %v874, %v983
        %v1017 = vmul.f32 %v879, %v988
        %v1018 = vmul.f32 %v882, %v993
        %v1019 = vmul.f32 %v887, %v998
        %v1020 = vmul.f32 %v890, %v1003
        %v1021 = vadd.f32 %v276, %v1005
        %v1022 = vadd.f32 %v277, %v1006
        %v1023 = vadd.f32 %v278, %v1007
        %v1024 = vadd.f32 %v279, %v1008
        %v1025 = vadd.f32 %v280, %v1009
        %v1026 = vadd.f32 %v281, %v1010
        %v1027 = vadd.f32 %v282, %v1011
        %v1028 = vadd.f32 %v283, %v1012
        %v1029 = vadd.f32 %v284, %v1013
        %v1030 = vadd.f32 %v285, %v1014
        %v1031 = vadd.f32 %v286, %v1015
        %v1032 = vadd.f32 %v287, %v1016
        %v1033 = vadd.f32 %v288, %v1017
        %v1034 = vadd.f32 %v289, %v1018
        %v1035 = vadd.f32 %v290, %v1019
        %v1036 = vadd.f32 %v291, %v1020
        %1037 = vst.msk [vmem:[%s261] sm:$0xff] %vm292, %v1021
        %1038 = vst.msk [vmem:[%s261 + $0x8] sm:$0xff] %vm292, %v1022
        %1039 = vst.msk [vmem:[%s261 + $0x10] sm:$0xff] %vm292, %v1023
        %1040 = vst.msk [vmem:[%s261 + $0x18] sm:$0xff] %vm292, %v1024
        %1041 = vst.msk [vmem:[%s261 + $0x20] sm:$0xff] %vm292, %v1025
        %1042 = vst.msk [vmem:[%s261 + $0x28] sm:$0xff] %vm292, %v1026
        %1043 = vst.msk [vmem:[%s261 + $0x30] sm:$0xff] %vm292, %v1027
        %1044 = vst.msk [vmem:[%s261 + $0x38] sm:$0xff] %vm292, %v1028
        %1045 = vst.msk [vmem:[%s261 + $0x40] sm:$0xff] %vm292, %v1029
        %1046 = vst.msk [vmem:[%s261 + $0x48] sm:$0xff] %vm292, %v1030
        %1047 = vst.msk [vmem:[%s261 + $0x50] sm:$0xff] %vm292, %v1031
        %1048 = vst.msk [vmem:[%s261 + $0x58] sm:$0xff] %vm292, %v1032
        %1049 = vst.msk [vmem:[%s261 + $0x60] sm:$0xff] %vm292, %v1033
        %1050 = vst.msk [vmem:[%s261 + $0x68] sm:$0xff] %vm292, %v1034
        %1051 = vst.msk [vmem:[%s261 + $0x70] sm:$0xff] %vm292, %v1035
        %1052 = vst.msk [vmem:[%s261 + $0x78] sm:$0xff] %vm292, %v1036
        %s1053 = sand.u32 %s164, 1
        %s1054 = scalar_lea.sflag [#allocation3], %s1053
        %s1055 = sand.u32 %s164, 1
        %s1056 = smul.addr %s1055, 128
        %s1057 = scalar_lea.vmem [#allocation2], %s1056
        // Predicated region
        $region45: #{msa_transition.1} parent=43 // pred_check
          %p1058 = pneg %p174
        $region46: #{msa_transition.1} parent=43 // pred_check_branch
          %1060 = sbr.rel (%p1058) target = $region48
        $region47: #{msa_transition.1} parent=43 // pred_region
          %s1061 = smul.u32 16, %s20
          %s1063 = ssub.s32 2048, 2048
          %1064 = vsyncadd %s1054, %s1063
          %s1065 = smul.addr %s1061, 128
          %s1066 = scalar_lea.hbm %s6, %s1065
          %s1067 = sshll.u32 %s1057, 4
          %s1068 = int_to_ptr.vmem [resolvable:$true] %s1067
          %1073 = dma.vmem_to_hbm [thread:$0]  %s1068, 2048, %s1066, %s1054, 128, 128, 8
        $region48: #{msa_transition.1} parent=43 // pred_fallthru
          _
      $region44: #{msa_transition.1} parent=5 // pred_fallthru
        _
      %p1074 = scmp.le.s32.totalorder 2, %s15
      // Predicated region
      $region49: #{msa_transition.1} parent=5 // pred_check
        %p1075 = pneg %p1074
      $region50: #{msa_transition.1} parent=5 // pred_check_branch
        %1077 = sbr.rel (%p1075) target = $region52
      $region51: #{msa_transition.1} parent=5 // pred_region
        %s1078 = ssub.s32 %s15, 2
        // Predicated region
        $region53: #{msa_transition.1} parent=51 // pred_check
          %p1079 = pneg %p180
        $region54: #{msa_transition.1} parent=51 // pred_check_branch
          %1081 = sbr.rel (%p1079) target = $region56
        $region55: #{msa_transition.1} parent=51 // pred_region
          %s1082 = sand.u32 %s165, 1
          %s1083 = scalar_lea.sflag [#allocation3], %s1082
          %s1084 = sand.u32 %s165, 1
          %s1085 = smul.addr %s1084, 128
          %s1086 = scalar_lea.vmem [#allocation2], %s1085
          %1087 = dma.done %s1083, 2048
        $region56: #{msa_transition.1} parent=51 // pred_fallthru
          _
      $region52: #{msa_transition.1} parent=5 // pred_fallthru
        _
    $region6: #{msa_transition.1} parent=1 // loop_footer
      %s19 = sadd.s32 1, %s15
    $region7: #{msa_transition.1} parent=1 // loop_footer_branch
      %14 = sbr.rel target = $region3
    $region8: #{msa_transition.1} parent=1 // loop_exit
      _
    %1088 = vsyncpa [#allocation3], 1
    %s1089 = scalar_lea.sflag [#allocation3], 1
    %1090 = vsyncpa %s1089, 1

</llo_original>
